<compile_context>
chip_gen: v7x
topology: tpu7x:2x2x1
jax: 0.10.0
libtpu: 0.0.40
codegen_flags: <defaults>
</compile_context>

<pallas_src>
import jax
import jax.numpy as jnp
from jax.experimental import pallas as pl
from jax.experimental.pallas import tpu as pltpu

_LANE = 128
_SUBLANE = 8
_NEG_BIG = -1e30  # pad-column bias so softmax mass on pad columns is exactly 0


def _round_up(n, m):
    return ((n + m - 1) // m) * m


def _fc_softmax_mix_kernel(x_ref, wfc_ref, bfc_ref, cat_ref, out_ref):
    # Linear: (Bt, Hp)bf16 @ (Hp, Cp)bf16 -> f32 logits, + f32 bias (1, Cp).
    logits = (
        jnp.dot(x_ref[...], wfc_ref[...], preferred_element_type=jnp.float32)
        + bfc_ref[...]
    )
    # Numerically stable softmax numerator, all in f32 on VPU/EUP.
    m = jnp.max(logits, axis=-1, keepdims=True)
    e = jnp.exp(logits - m)
    denom = jnp.sum(e, axis=-1, keepdims=True)
    # Second MXU matmul on the unnormalized numerator (bf16 operands, f32 acc);
    # normalization deferred to a cheap EUP reciprocal on the (Bt, Hp) result.
    mix = jnp.dot(
        e.astype(cat_ref.dtype), cat_ref[...], preferred_element_type=jnp.float32
    )
    out_ref[...] = (mix * pl.reciprocal(denom, approx=True)).astype(out_ref.dtype)


def init_params(key, *, hidden_size, n_categories):
    """Raw f32 parameters matching the PyTorch module (weight pre-transposed)."""
    k_w, k_b, k_c = jax.random.split(key, 3)
    scale = 1.0 / jnp.sqrt(hidden_size)  # nn.Linear default init range
    return {
        # stored as (H, C) = fc.weight.T so both matmuls are right-multiplies
        "w_fc": jax.random.uniform(
            k_w, (hidden_size, n_categories), jnp.float32, -scale, scale
        ),
        "b_fc": jax.random.uniform(k_b, (n_categories,), jnp.float32, -scale, scale),
        # nn.init.normal_(categories, mean=0.0, std=0.02)
        "categories": 0.02
        * jax.random.normal(k_c, (n_categories, hidden_size), jnp.float32),
    }


def prepare_params(params):
    """One-time lane padding (H, C -> multiples of 128) + bf16 cast of weights."""
    w_fc = params["w_fc"]          # (H, C) f32
    b_fc = params["b_fc"]          # (C,)   f32
    cats = params["categories"]    # (C, H) f32
    H, C = w_fc.shape
    Hp, Cp = _round_up(H, _LANE), _round_up(C, _LANE)

    w_p = jnp.zeros((Hp, Cp), jnp.bfloat16).at[:H, :C].set(w_fc.astype(jnp.bfloat16))
    # pad bias entries = -1e30 -> exp underflows to 0 -> zero softmax mass
    b_p = jnp.full((1, Cp), _NEG_BIG, jnp.float32).at[0, :C].set(
        b_fc.astype(jnp.float32)
    )
    c_p = jnp.zeros((Cp, Hp), jnp.bfloat16).at[:C, :H].set(cats.astype(jnp.bfloat16))
    return {"w_fc": w_p, "b_fc": b_p, "categories": c_p, "H": H, "C": C}


def model_forward(x, prepared, *, block_b=None):
    """x: (B, H) f32.  Returns (B, H) f32 = softmax(fc(x)) @ categories."""
    H = prepared["H"]
    w_p, b_p, c_p = prepared["w_fc"], prepared["b_fc"], prepared["categories"]
    Hp, Cp = w_p.shape
    B, H_in = x.shape
    assert H_in == H, f"expected x last dim {H}, got {H_in}"

    # --- batch tile selection (generation-aware defaults, (8,128)-safe) -----
    if block_b is None:
        if B <= 512:
            block_b = B  # single grid step, zero per-step overhead
        else:
            # split the batch so the "parallel" axis can shard across v7x's
            # two TensorCores while keeping tiles large for v5e/v6e.
            block_b = min(512, _round_up(pl.cdiv(B, 2), _SUBLANE))
    block_b = min(block_b, B)
    if block_b != B and block_b % _SUBLANE != 0:
        block_b = min(_round_up(block_b, _SUBLANE), B)
    grid = (pl.cdiv(B, block_b),)

    # --- lane-dense, bf16 input tile ----------------------------------------
    x_p = jnp.zeros((B, Hp), jnp.bfloat16).at[:, :H].set(x.astype(jnp.bfloat16))

    # --- explicit VMEM budget: single-buffered weights + 2x buffered tiles ---
    weight_bytes = Hp * Cp * 2 + Cp * 4 + Cp * Hp * 2
    tile_bytes = 2 * block_b * Hp * 2 + 2 * block_b * Hp * 4
    vmem_limit = int(min(max(2 * (weight_bytes + tile_bytes), 16 << 20), 48 << 20))

    x_spec = pl.BlockSpec((block_b, Hp), lambda i: (i, 0))
    out_spec = pl.BlockSpec((block_b, Hp), lambda i: (i, 0))

    def _weight_specs(single_buffer):
        shapes = [(Hp, Cp), (1, Cp), (Cp, Hp)]
        if single_buffer and hasattr(pl, "Buffered"):
            # index_map is constant -> double-buffering these is pure waste
            return [
                pl.BlockSpec(s, lambda i: (0, 0), pipeline_mode=pl.Buffered(1))
                for s in shapes
            ]
        return [pl.BlockSpec(s, lambda i: (0, 0)) for s in shapes]

    def _run(single_buffer):
        return pl.pallas_call(
            _fc_softmax_mix_kernel,
            out_shape=jax.ShapeDtypeStruct((B, Hp), jnp.float32),
            grid=grid,
            in_specs=[x_spec] + _weight_specs(single_buffer),
            out_specs=out_spec,
            compiler_params=pltpu.CompilerParams(
                dimension_semantics=("parallel",),
                vmem_limit_bytes=vmem_limit,
            ),
        )(x_p, w_p, b_p, c_p)

    try:
        out_p = _run(True)
    except Exception:
        # Fall back to default (double-buffered) resident weights if the
        # single-buffer pipeline hint is rejected on this jax/libtpu version.
        out_p = _run(False)

    return out_p[:, :H]


def model_forward_ref(x, raw_params):
    """Pure-JAX f32 reference mirroring fc -> softmax -> matmul(categories)."""
    logits = x @ raw_params["w_fc"] + raw_params["b_fc"]
    p = jax.nn.softmax(logits, axis=-1)
    return p @ raw_params["categories"]


if __name__ == "__main__":
    # Small shapes consistent with the module's forward pass.
    hidden_size = 32
    n_categories = 16
    B = 8

    key = jax.random.PRNGKey(0)
    k_params, k_x = jax.random.split(key)
    raw_params = init_params(
        k_params, hidden_size=hidden_size, n_categories=n_categories
    )
    prepared = prepare_params(raw_params)
    x = jax.random.normal(k_x, (B, hidden_size), jnp.float32)

    out = jax.block_until_ready(model_forward(x, prepared))
    ref = model_forward_ref(x, raw_params)

    assert out.shape == (B, hidden_size)
    # bf16 MXU operands with f32 accumulation -> loosened tolerance vs f32 ref.
    assert jnp.allclose(out, ref, atol=1e-2, rtol=1e-2), "mismatch vs JAX reference"

    print("KERNEL_OK")
</pallas_src>

<mosaic_0001>
module attributes {stable_mosaic.version = 11 : i64} {
  func.func @_fc_softmax_mix_kernel(%arg0: i32, %arg1: memref<8x128xbf16, #tpu.memory_space<vmem>>, %arg2: memref<128x128xbf16, #tpu.memory_space<vmem>>, %arg3: memref<1x128xf32, #tpu.memory_space<vmem>>, %arg4: memref<128x128xbf16, #tpu.memory_space<vmem>>, %arg5: memref<8x128xf32, #tpu.memory_space<vmem>>) attributes {dimension_semantics = [#tpu.dimension_semantics<parallel>], iteration_bounds = array<i64: 1>, scalar_prefetch = 0 : i64, scratch_operands = 0 : i64, tpu.core_type = #tpu.core_type<tc>, window_params = [{transform_indices = @transform_0, window_bounds = array<i64: 8, 128>}, {pipeline_mode = #tpu.pipeline_mode<synchronous>, transform_indices = @transform_1, window_bounds = array<i64: 128, 128>}, {pipeline_mode = #tpu.pipeline_mode<synchronous>, transform_indices = @transform_2, window_bounds = array<i64: 1, 128>}, {pipeline_mode = #tpu.pipeline_mode<synchronous>, transform_indices = @transform_3, window_bounds = array<i64: 128, 128>}, {transform_indices = @transform_4, window_bounds = array<i64: 8, 128>}]} {
    %c0 = arith.constant 0 : index
    %c0_0 = arith.constant 0 : index
    %0 = vector.load %arg1[%c0, %c0_0] : memref<8x128xbf16, #tpu.memory_space<vmem>>, vector<8x128xbf16>
    %c0_1 = arith.constant 0 : index
    %c0_2 = arith.constant 0 : index
    %1 = vector.load %arg2[%c0_1, %c0_2] : memref<128x128xbf16, #tpu.memory_space<vmem>>, vector<128x128xbf16>
    %cst = arith.constant dense<0.000000e+00> : vector<8x128xf32>
    %2 = tpu.matmul %0, %1, %cst {dimension_numbers = #tpu.dot_dimension_numbers<[1], [0], [0], [1], [0, 0, 1, 1], [], []>} : vector<8x128xbf16>, vector<128x128xbf16>, vector<8x128xf32> -> vector<8x128xf32>
    %c0_3 = arith.constant 0 : index
    %c0_4 = arith.constant 0 : index
    %3 = vector.load %arg3[%c0_3, %c0_4] : memref<1x128xf32, #tpu.memory_space<vmem>>, vector<1x128xf32>
    %4 = vector.broadcast %3 : vector<1x128xf32> to vector<8x128xf32>
    %5 = arith.addf %2, %4 : vector<8x128xf32>
    %cst_5 = arith.constant dense<0xFF800000> : vector<8xf32>
    %6 = vector.multi_reduction <maximumf>, %5, %cst_5 [1] : vector<8x128xf32> to vector<8xf32>
    %7 = vector.shape_cast %6 : vector<8xf32> to vector<8x1xf32>
    %8 = vector.broadcast %7 : vector<8x1xf32> to vector<8x128xf32>
    %9 = arith.subf %5, %8 : vector<8x128xf32>
    %10 = math.exp %9 : vector<8x128xf32>
    %cst_6 = arith.constant dense<0.000000e+00> : vector<8xf32>
    %11 = vector.multi_reduction <add>, %10, %cst_6 [1] : vector<8x128xf32> to vector<8xf32>
    %12 = vector.shape_cast %11 : vector<8xf32> to vector<8x1xf32>
    %13 = arith.truncf %10 : vector<8x128xf32> to vector<8x128xbf16>
    %c0_7 = arith.constant 0 : index
    %c0_8 = arith.constant 0 : index
    %14 = vector.load %arg4[%c0_7, %c0_8] : memref<128x128xbf16, #tpu.memory_space<vmem>>, vector<128x128xbf16>
    %cst_9 = arith.constant dense<0.000000e+00> : vector<8x128xf32>
    %15 = tpu.matmul %13, %14, %cst_9 {dimension_numbers = #tpu.dot_dimension_numbers<[1], [0], [0], [1], [0, 0, 1, 1], [], []>} : vector<8x128xbf16>, vector<128x128xbf16>, vector<8x128xf32> -> vector<8x128xf32>
    %16 = tpu.reciprocal %12 {approx = true} : vector<8x1xf32> -> vector<8x1xf32>
    %17 = vector.broadcast %16 : vector<8x1xf32> to vector<8x128xf32>
    %18 = arith.mulf %15, %17 : vector<8x128xf32>
    %c0_10 = arith.constant 0 : index
    %c0_11 = arith.constant 0 : index
    %19 = vector.load %arg5[%c0_10, %c0_11] : memref<8x128xf32, #tpu.memory_space<vmem>>, vector<8x128xf32>
    tpu.vector_store %arg5[%c0_10, %c0_11], %18 {strides = array<i32>} : memref<8x128xf32, #tpu.memory_space<vmem>>, vector<8x128xf32>,
    return
  }
  func.func @transform_0(%arg0: i32) -> (i32, i32) {
    %c0_i32 = arith.constant 0 : i32
    %c0_i32_0 = arith.constant 0 : i32
    return %arg0, %c0_i32 : i32, i32
  }
  func.func @transform_1(%arg0: i32) -> (i32, i32) {
    %c0_i32 = arith.constant 0 : i32
    %c0_i32_0 = arith.constant 0 : i32
    %c0_i32_1 = arith.constant 0 : i32
    return %c0_i32, %c0_i32_0 : i32, i32
  }
  func.func @transform_2(%arg0: i32) -> (i32, i32) {
    %c0_i32 = arith.constant 0 : i32
    %c0_i32_0 = arith.constant 0 : i32
    %c0_i32_1 = arith.constant 0 : i32
    return %c0_i32, %c0_i32_0 : i32, i32
  }
  func.func @transform_3(%arg0: i32) -> (i32, i32) {
    %c0_i32 = arith.constant 0 : i32
    %c0_i32_0 = arith.constant 0 : i32
    %c0_i32_1 = arith.constant 0 : i32
    return %c0_i32, %c0_i32_0 : i32, i32
  }
  func.func @transform_4(%arg0: i32) -> (i32, i32) {
    %c0_i32 = arith.constant 0 : i32
    %c0_i32_0 = arith.constant 0 : i32
    return %arg0, %c0_i32 : i32, i32
  }
}

module attributes {stable_mosaic.version = 11 : i64} {
  func.func @_fc_softmax_mix_kernel(%arg0: i32, %arg1: memref<8x128xbf16, #tpu.memory_space<vmem>>, %arg2: memref<128x128xbf16, #tpu.memory_space<vmem>>, %arg3: memref<1x128xf32, #tpu.memory_space<vmem>>, %arg4: memref<128x128xbf16, #tpu.memory_space<vmem>>, %arg5: memref<8x128xf32, #tpu.memory_space<vmem>>) attributes {dimension_semantics = [#tpu.dimension_semantics<parallel>], iteration_bounds = array<i64: 1>, scalar_prefetch = 0 : i64, scratch_operands = 0 : i64, tpu.core_type = #tpu.core_type<tc>, window_params = [{transform_indices = @transform_0, window_bounds = array<i64: 8, 128>}, {pipeline_mode = #tpu.pipeline_mode<synchronous>, transform_indices = @transform_1, window_bounds = array<i64: 128, 128>}, {pipeline_mode = #tpu.pipeline_mode<synchronous>, transform_indices = @transform_2, window_bounds = array<i64: 1, 128>}, {pipeline_mode = #tpu.pipeline_mode<synchronous>, transform_indices = @transform_3, window_bounds = array<i64: 128, 128>}, {transform_indices = @transform_4, window_bounds = array<i64: 8, 128>}]} {
    %c0 = arith.constant 0 : index
    %c0_0 = arith.constant 0 : index
    %0 = vector.load %arg1[%c0, %c0_0] : memref<8x128xbf16, #tpu.memory_space<vmem>>, vector<8x128xbf16>
    %c0_1 = arith.constant 0 : index
    %c0_2 = arith.constant 0 : index
    %1 = vector.load %arg2[%c0_1, %c0_2] : memref<128x128xbf16, #tpu.memory_space<vmem>>, vector<128x128xbf16>
    %cst = arith.constant dense<0.000000e+00> : vector<8x128xf32>
    %2 = tpu.matmul %0, %1, %cst {dimension_numbers = #tpu.dot_dimension_numbers<[1], [0], [0], [1], [0, 0, 1, 1], [], []>} : vector<8x128xbf16>, vector<128x128xbf16>, vector<8x128xf32> -> vector<8x128xf32>
    %c0_3 = arith.constant 0 : index
    %c0_4 = arith.constant 0 : index
    %3 = vector.load %arg3[%c0_3, %c0_4] : memref<1x128xf32, #tpu.memory_space<vmem>>, vector<1x128xf32>
    %4 = vector.broadcast %3 : vector<1x128xf32> to vector<8x128xf32>
    %5 = arith.addf %2, %4 : vector<8x128xf32>
    %cst_5 = arith.constant dense<0xFF800000> : vector<8xf32>
    %6 = vector.multi_reduction <maximumf>, %5, %cst_5 [1] : vector<8x128xf32> to vector<8xf32>
    %7 = vector.shape_cast %6 : vector<8xf32> to vector<8x1xf32>
    %8 = vector.broadcast %7 : vector<8x1xf32> to vector<8x128xf32>
    %9 = arith.subf %5, %8 : vector<8x128xf32>
    %10 = math.exp %9 : vector<8x128xf32>
    %cst_6 = arith.constant dense<0.000000e+00> : vector<8xf32>
    %11 = vector.multi_reduction <add>, %10, %cst_6 [1] : vector<8x128xf32> to vector<8xf32>
    %12 = vector.shape_cast %11 : vector<8xf32> to vector<8x1xf32>
    %13 = arith.truncf %10 : vector<8x128xf32> to vector<8x128xbf16>
    %c0_7 = arith.constant 0 : index
    %c0_8 = arith.constant 0 : index
    %14 = vector.load %arg4[%c0_7, %c0_8] : memref<128x128xbf16, #tpu.memory_space<vmem>>, vector<128x128xbf16>
    %cst_9 = arith.constant dense<0.000000e+00> : vector<8x128xf32>
    %15 = tpu.matmul %13, %14, %cst_9 {dimension_numbers = #tpu.dot_dimension_numbers<[1], [0], [0], [1], [0, 0, 1, 1], [], []>} : vector<8x128xbf16>, vector<128x128xbf16>, vector<8x128xf32> -> vector<8x128xf32>
    %16 = tpu.reciprocal %12 {approx = true} : vector<8x1xf32> -> vector<8x1xf32>
    %17 = vector.broadcast %16 : vector<8x1xf32> to vector<8x128xf32>
    %18 = arith.mulf %15, %17 : vector<8x128xf32>
    %c0_10 = arith.constant 0 : index
    %c0_11 = arith.constant 0 : index
    %19 = vector.load %arg5[%c0_10, %c0_11] : memref<8x128xf32, #tpu.memory_space<vmem>>, vector<8x128xf32>
    tpu.vector_store %arg5[%c0_10, %c0_11], %18 {strides = array<i32>} : memref<8x128xf32, #tpu.memory_space<vmem>>, vector<8x128xf32>,
    return
  }
  func.func @transform_0(%arg0: i32) -> (i32, i32) {
    %c0_i32 = arith.constant 0 : i32
    %c0_i32_0 = arith.constant 0 : i32
    return %arg0, %c0_i32 : i32, i32
  }
  func.func @transform_1(%arg0: i32) -> (i32, i32) {
    %c0_i32 = arith.constant 0 : i32
    %c0_i32_0 = arith.constant 0 : i32
    %c0_i32_1 = arith.constant 0 : i32
    return %c0_i32, %c0_i32_0 : i32, i32
  }
  func.func @transform_2(%arg0: i32) -> (i32, i32) {
    %c0_i32 = arith.constant 0 : i32
    %c0_i32_0 = arith.constant 0 : i32
    %c0_i32_1 = arith.constant 0 : i32
    return %c0_i32, %c0_i32_0 : i32, i32
  }
  func.func @transform_3(%arg0: i32) -> (i32, i32) {
    %c0_i32 = arith.constant 0 : i32
    %c0_i32_0 = arith.constant 0 : i32
    %c0_i32_1 = arith.constant 0 : i32
    return %c0_i32, %c0_i32_0 : i32, i32
  }
  func.func @transform_4(%arg0: i32) -> (i32, i32) {
    %c0_i32 = arith.constant 0 : i32
    %c0_i32_0 = arith.constant 0 : i32
    return %arg0, %c0_i32 : i32, i32
  }
}

</mosaic_0001>

<llo_original>
// kernel: tpu_custom_call.1
$region0: #{tpu_custom_call.1}
  #allocation0 [shape = 'u32[]', space=smem, size = 0x4, offset = 0x4, fixed_abs, tag = 'smem constant byte address 0x4 - core index']
  #allocation1 [shape = 'u32[144,128]{1,0:T(1,128)}', space=vmem, size = 0x12000, scoped, tag = 'internal scratch']
  %s0 = inlined_call_operand.hbm [shape: bf16[8,128], index: 0, kind: input, shape index: {}]
  %s1 = inlined_call_operand.hbm [shape: bf16[128,128], index: 1, kind: input, shape index: {}]
  %s2 = inlined_call_operand.vmem [shape: f32[1,128], index: 2, kind: input, shape index: {}]
  %s3 = inlined_call_operand.hbm [shape: bf16[128,128], index: 3, kind: input, shape index: {}]
  %s4 = inlined_call_operand.hbm [shape: f32[8,128], index: 4, kind: output, shape index: {}]
  %s5 = sld [smem:[#allocation0]]
  $region38: #{tpu_custom_call.1} parent=0
    _
  %s7 = ssub.s32 1, %s5
  %s8 = scalar_select 0, %s7, %s5
  $region1: #{tpu_custom_call.1} parent=0
    #allocation2 [shape = 'u8[2048]{0}', space=vmem, size = 0x800, scoped, tag = 'input window, operand 0, single buffered']
    #allocation3 [shape = 's32[1]{0}', space=sflag, size = 0x4, scoped, tag = 'scoped memory for tpu_custom_call.1']
    #allocation4 [shape = 's32[1]{0}', space=sflag, size = 0x4, scoped, tag = 'scoped memory for tpu_custom_call.1']
    #allocation5 [shape = 'u8[32768]{0}', space=vmem, size = 0x8000, scoped, tag = 'input window, operand 1, single buffered']
    #allocation6 [shape = 's32[1]{0}', space=sflag, size = 0x4, scoped, tag = 'scoped memory for tpu_custom_call.1']
    #allocation7 [shape = 'u8[32768]{0}', space=vmem, size = 0x8000, scoped, tag = 'input window, operand 3, single buffered']
    #allocation8 [shape = 'u8[4096]{0}', space=vmem, size = 0x1000, scoped, tag = 'output window, operand 0, single buffered']
    %9 = vsyncpa [#allocation3], 0
    %10 = vsyncpa [#allocation6], 0
    %11 = vsyncpa [#allocation4], 0
    // Predicated region
    $region2: #{tpu_custom_call.1} parent=1 // pred_check
      _
    $region3: #{tpu_custom_call.1} parent=1 // pred_check_branch
      %13 = sbr.rel (0) target = $region5
    $region4: #{tpu_custom_call.1} parent=1 // pred_region
      %s15 = ssub.s32 64, 64
      %16 = vsyncadd [#allocation3], %s15
      %s18 = sshll.u32 [#allocation2], 4
      %s19 = int_to_ptr.vmem [resolvable:$true] %s18
      %21 = dma.hbm_to_vmem [thread:$0]  %s0, 64, %s19, [#allocation3]
    $region5: #{tpu_custom_call.1} parent=1 // pred_fallthru
      _
    // Predicated region
    $region6: #{tpu_custom_call.1} parent=1 // pred_check
      _
    $region7: #{tpu_custom_call.1} parent=1 // pred_check_branch
      %23 = sbr.rel (0) target = $region9
    $region8: #{tpu_custom_call.1} parent=1 // pred_region
      %s25 = ssub.s32 1024, 1024
      %26 = vsyncadd [#allocation6], %s25
      %s27 = sshll.u32 [#allocation5], 4
      %s28 = int_to_ptr.vmem [resolvable:$true] %s27
      %33 = dma.hbm_to_vmem [thread:$0]  %s1, 1024, %s28, [#allocation6], 64, 64, 4
    $region9: #{tpu_custom_call.1} parent=1 // pred_fallthru
      _
    // Predicated region
    $region10: #{tpu_custom_call.1} parent=1 // pred_check
      _
    $region11: #{tpu_custom_call.1} parent=1 // pred_check_branch
      %35 = sbr.rel (0) target = $region13
    $region12: #{tpu_custom_call.1} parent=1 // pred_region
      _
    $region13: #{tpu_custom_call.1} parent=1 // pred_fallthru
      _
    // Predicated region
    $region14: #{tpu_custom_call.1} parent=1 // pred_check
      _
    $region15: #{tpu_custom_call.1} parent=1 // pred_check_branch
      %37 = sbr.rel (0) target = $region17
    $region16: #{tpu_custom_call.1} parent=1 // pred_region
      %s39 = ssub.s32 1024, 1024
      %40 = vsyncadd [#allocation6], %s39
      %s41 = sshll.u32 [#allocation7], 4
      %s42 = int_to_ptr.vmem [resolvable:$true] %s41
      %47 = dma.hbm_to_vmem [thread:$0]  %s3, 1024, %s42, [#allocation6], 64, 64, 4
    $region17: #{tpu_custom_call.1} parent=1 // pred_fallthru
      _
    // Predicated region
    $region18: #{tpu_custom_call.1} parent=1 // pred_check
      _
    $region19: #{tpu_custom_call.1} parent=1 // pred_check_branch
      %49 = sbr.rel (0) target = $region21
    $region20: #{tpu_custom_call.1} parent=1 // pred_region
      %50 = dma.done [#allocation3], 64
    $region21: #{tpu_custom_call.1} parent=1 // pred_fallthru
      _
    // Predicated region
    $region22: #{tpu_custom_call.1} parent=1 // pred_check
      _
    $region23: #{tpu_custom_call.1} parent=1 // pred_check_branch
      %52 = sbr.rel (0) target = $region25
    $region24: #{tpu_custom_call.1} parent=1 // pred_region
      %53 = dma.done [#allocation6], 1024
    $region25: #{tpu_custom_call.1} parent=1 // pred_fallthru
      _
    // Predicated region
    $region26: #{tpu_custom_call.1} parent=1 // pred_check
      _
    $region27: #{tpu_custom_call.1} parent=1 // pred_check_branch
      %55 = sbr.rel (0) target = $region29
    $region28: #{tpu_custom_call.1} parent=1 // pred_region
      %56 = dma.done [#allocation6], 1024
    $region29: #{tpu_custom_call.1} parent=1 // pred_fallthru
      _
    %v58 = vld [vmem:[#allocation2] sm:$0xf]
    %v59 = vld [vmem:[#allocation5] sm:$0xf]
    %v60 = vld [vmem:[#allocation5 + $0x4] sm:$0xf]
    %v61 = vld [vmem:[#allocation5 + $0x8] sm:$0xf]
    %v62 = vld [vmem:[#allocation5 + $0xc] sm:$0xf]
    %v63 = vld [vmem:[#allocation5 + $0x10] sm:$0xf]
    %v64 = vld [vmem:[#allocation5 + $0x14] sm:$0xf]
    %v65 = vld [vmem:[#allocation5 + $0x18] sm:$0xf]
    %v66 = vld [vmem:[#allocation5 + $0x1c] sm:$0xf]
    %v67 = vld [vmem:[#allocation5 + $0x20] sm:$0xf]
    %v68 = vld [vmem:[#allocation5 + $0x24] sm:$0xf]
    %v69 = vld [vmem:[#allocation5 + $0x28] sm:$0xf]
    %v70 = vld [vmem:[#allocation5 + $0x2c] sm:$0xf]
    %v71 = vld [vmem:[#allocation5 + $0x30] sm:$0xf]
    %v72 = vld [vmem:[#allocation5 + $0x34] sm:$0xf]
    %v73 = vld [vmem:[#allocation5 + $0x38] sm:$0xf]
    %v74 = vld [vmem:[#allocation5 + $0x3c] sm:$0xf]
    %v75 = vld [vmem:[%s2] sm:$0x1]
    %v77 = vlaneseq
    %v78 = vshrl.u32 %v77, 7
    %v79 = vsub.s32 0, %v78
    %v80 = vrot.slane %v75, %v79
    %v98 = vunpack.c.l.b16 %v59
    %v99 = vunpack.c.l.b16 %v60
    %v100 = vunpack.c.l.b16 %v61
    %v101 = vunpack.c.l.b16 %v62
    %v102 = vunpack.c.l.b16 %v63
    %v103 = vunpack.c.l.b16 %v64
    %v104 = vunpack.c.l.b16 %v65
    %v105 = vunpack.c.l.b16 %v66
    %v106 = vunpack.c.l.b16 %v67
    %v107 = vunpack.c.l.b16 %v68
    %v108 = vunpack.c.l.b16 %v69
    %v109 = vunpack.c.l.b16 %v70
    %v110 = vunpack.c.l.b16 %v71
    %v111 = vunpack.c.l.b16 %v72
    %v112 = vunpack.c.l.b16 %v73
    %v113 = vunpack.c.l.b16 %v74
    %v114 = vpack.c.b16 %v99, %v98
    %v115 = vpack.c.b16 %v101, %v100
    %v116 = vpack.c.b16 %v103, %v102
    %v117 = vpack.c.b16 %v105, %v104
    %v118 = vpack.c.b16 %v107, %v106
    %v119 = vpack.c.b16 %v109, %v108
    %v120 = vpack.c.b16 %v111, %v110
    %v121 = vpack.c.b16 %v113, %v112
    %130 = vmatprep.subr.bf16.mxu0 0
    %131 = vmatpush1.bf16.msra.mxu0 %v114
    %132 = vmatprep.subr.bf16.mxu0 0
    %133 = vmatpush1.bf16.msra.mxu0 %v115
    %134 = vmatprep.subr.bf16.mxu0 0
    %135 = vmatpush1.bf16.msra.mxu0 %v116
    %136 = vmatprep.subr.bf16.mxu0 0
    %137 = vmatpush1.bf16.msra.mxu0 %v117
    %138 = vmatprep.subr.bf16.mxu0 0
    %139 = vmatpush1.bf16.msra.mxu0 %v118
    %140 = vmatprep.subr.bf16.mxu0 0
    %141 = vmatpush1.bf16.msra.mxu0 %v119
    %142 = vmatprep.subr.bf16.mxu0 0
    %143 = vmatpush1.bf16.msra.mxu0 %v120
    %144 = vmatprep.subr.bf16.mxu0 0
    %145 = vmatpush1.bf16.msra.mxu0 %v121
    %146 = vmatprep.subr.bf16.mxu0 0
    %147 = vmatpush1.bf16.msra.mxu0 0
    %148 = vmatprep.subr.bf16.mxu0 0
    %149 = vmatpush1.bf16.msra.mxu0 0
    %150 = vmatprep.subr.bf16.mxu0 0
    %151 = vmatpush1.bf16.msra.mxu0 0
    %152 = vmatprep.subr.bf16.mxu0 0
    %153 = vmatpush1.bf16.msra.mxu0 0
    %154 = vmatprep.subr.bf16.mxu0 0
    %155 = vmatpush1.bf16.msra.mxu0 0
    %156 = vmatprep.subr.bf16.mxu0 0
    %157 = vmatpush1.bf16.msra.mxu0 0
    %158 = vmatprep.subr.bf16.mxu0 0
    %159 = vmatpush1.bf16.msra.mxu0 0
    %160 = vmatprep.subr.bf16.mxu0 0
    %161 = vmatpush1.bf16.msra.mxu0 0
    %162 = vmatprep.mubr.bf16.mxu0 0
    %163 = vmatmul.mubr.bf16.gmra.mrb[0].mxu0 %v58
    %v164 = vpop.f32.mrb[0].mxu0
    %v165 = vadd.f32 %v80, %v164
    %v166 = vpop.f32.mrb[0].mxu0
    %v167 = vpop.f32.mrb[0].mxu0
    %v168 = vpop.f32.mrb[0].mxu0
    %169 = vdwg.mxu0
    %170 = vmax.xlane.f32.xlu0 %v165
    %v171 = vpop.xlane.xlu0 %170
    %v172 = vsub.f32 %v165, %v171
    %v173 = vmul.f32 %v172, 1.442695
    %v174 = vpow.pop %v173
    %175 = vadd.xlane.f32.xlu0 %v174
    %v176 = vpop.xlane.xlu0 %175
    %v177 = vpack.c.bf16 %v174, %v174
    %v178 = vld [vmem:[#allocation7] sm:$0xf]
    %v179 = vld [vmem:[#allocation7 + $0x4] sm:$0xf]
    %v180 = vld [vmem:[#allocation7 + $0x8] sm:$0xf]
    %v181 = vld [vmem:[#allocation7 + $0xc] sm:$0xf]
    %v182 = vld [vmem:[#allocation7 + $0x10] sm:$0xf]
    %v183 = vld [vmem:[#allocation7 + $0x14] sm:$0xf]
    %v184 = vld [vmem:[#allocation7 + $0x18] sm:$0xf]
    %v185 = vld [vmem:[#allocation7 + $0x1c] sm:$0xf]
    %v186 = vld [vmem:[#allocation7 + $0x20] sm:$0xf]
    %v187 = vld [vmem:[#allocation7 + $0x24] sm:$0xf]
    %v188 = vld [vmem:[#allocation7 + $0x28] sm:$0xf]
    %v189 = vld [vmem:[#allocation7 + $0x2c] sm:$0xf]
    %v190 = vld [vmem:[#allocation7 + $0x30] sm:$0xf]
    %v191 = vld [vmem:[#allocation7 + $0x34] sm:$0xf]
    %v192 = vld [vmem:[#allocation7 + $0x38] sm:$0xf]
    %v193 = vld [vmem:[#allocation7 + $0x3c] sm:$0xf]
    %v210 = vunpack.c.l.b16 %v178
    %v211 = vunpack.c.l.b16 %v179
    %v212 = vunpack.c.l.b16 %v180
    %v213 = vunpack.c.l.b16 %v181
    %v214 = vunpack.c.l.b16 %v182
    %v215 = vunpack.c.l.b16 %v183
    %v216 = vunpack.c.l.b16 %v184
    %v217 = vunpack.c.l.b16 %v185
    %v218 = vunpack.c.l.b16 %v186
    %v219 = vunpack.c.l.b16 %v187
    %v220 = vunpack.c.l.b16 %v188
    %v221 = vunpack.c.l.b16 %v189
    %v222 = vunpack.c.l.b16 %v190
    %v223 = vunpack.c.l.b16 %v191
    %v224 = vunpack.c.l.b16 %v192
    %v225 = vunpack.c.l.b16 %v193
    %v226 = vpack.c.b16 %v211, %v210
    %v227 = vpack.c.b16 %v213, %v212
    %v228 = vpack.c.b16 %v215, %v214
    %v229 = vpack.c.b16 %v217, %v216
    %v230 = vpack.c.b16 %v219, %v218
    %v231 = vpack.c.b16 %v221, %v220
    %v232 = vpack.c.b16 %v223, %v222
    %v233 = vpack.c.b16 %v225, %v224
    %242 = vmatprep.subr.bf16.mxu0 0
    %243 = vmatpush1.bf16.msra.mxu0 %v226
    %244 = vmatprep.subr.bf16.mxu0 0
    %245 = vmatpush1.bf16.msra.mxu0 %v227
    %246 = vmatprep.subr.bf16.mxu0 0
    %247 = vmatpush1.bf16.msra.mxu0 %v228
    %248 = vmatprep.subr.bf16.mxu0 0
    %249 = vmatpush1.bf16.msra.mxu0 %v229
    %250 = vmatprep.subr.bf16.mxu0 0
    %251 = vmatpush1.bf16.msra.mxu0 %v230
    %252 = vmatprep.subr.bf16.mxu0 0
    %253 = vmatpush1.bf16.msra.mxu0 %v231
    %254 = vmatprep.subr.bf16.mxu0 0
    %255 = vmatpush1.bf16.msra.mxu0 %v232
    %256 = vmatprep.subr.bf16.mxu0 0
    %257 = vmatpush1.bf16.msra.mxu0 %v233
    %258 = vmatprep.subr.bf16.mxu0 0
    %259 = vmatpush1.bf16.msra.mxu0 0
    %260 = vmatprep.subr.bf16.mxu0 0
    %261 = vmatpush1.bf16.msra.mxu0 0
    %262 = vmatprep.subr.bf16.mxu0 0
    %263 = vmatpush1.bf16.msra.mxu0 0
    %264 = vmatprep.subr.bf16.mxu0 0
    %265 = vmatpush1.bf16.msra.mxu0 0
    %266 = vmatprep.subr.bf16.mxu0 0
    %267 = vmatpush1.bf16.msra.mxu0 0
    %268 = vmatprep.subr.bf16.mxu0 0
    %269 = vmatpush1.bf16.msra.mxu0 0
    %270 = vmatprep.subr.bf16.mxu0 0
    %271 = vmatpush1.bf16.msra.mxu0 0
    %272 = vmatprep.subr.bf16.mxu0 0
    %273 = vmatpush1.bf16.msra.mxu0 0
    %274 = vmatprep.mubr.bf16.mxu0 0
    %275 = vmatmul.mubr.bf16.gmra.mrb[0].mxu0 %v177
    %v276 = vpop.f32.mrb[0].mxu0
    %v277 = vadd.f32 0.0, %v276
    %v278 = vpop.f32.mrb[0].mxu0
    %v279 = vpop.f32.mrb[0].mxu0
    %v280 = vpop.f32.mrb[0].mxu0
    %281 = vdwg.mxu0
    %v282 = vrcp.pop %v176
    %v283 = vmul.f32 %v277, %v282
    %284 = vst [vmem:[#allocation8] sm:$0xff] %v283
    // Predicated region
    $region30: #{tpu_custom_call.1} parent=1 // pred_check
      _
    $region31: #{tpu_custom_call.1} parent=1 // pred_check_branch
      %286 = sbr.rel (0) target = $region33
    $region32: #{tpu_custom_call.1} parent=1 // pred_region
      %s288 = ssub.s32 128, 128
      %289 = vsyncadd [#allocation4], %s288
      %s291 = sshll.u32 [#allocation8], 4
      %s292 = int_to_ptr.vmem [resolvable:$true] %s291
      %294 = dma.vmem_to_hbm [thread:$0]  %s292, 128, %s4, [#allocation4]
    $region33: #{tpu_custom_call.1} parent=1 // pred_fallthru
      _
    // Predicated region
    $region34: #{tpu_custom_call.1} parent=1 // pred_check
      _
    $region35: #{tpu_custom_call.1} parent=1 // pred_check_branch
      %296 = sbr.rel (0) target = $region37
    $region36: #{tpu_custom_call.1} parent=1 // pred_region
      %297 = dma.done [#allocation4], 128
    $region37: #{tpu_custom_call.1} parent=1 // pred_fallthru
      _
    %298 = vsyncpa [#allocation3], 1
    %299 = vsyncpa [#allocation6], 1
    %300 = vsyncpa [#allocation4], 1

// kernel: tpu_custom_call.1
$region0: #{tpu_custom_call.1}
  #allocation0 [shape = 'u32[]', space=smem, size = 0x4, offset = 0x4, fixed_abs, tag = 'smem constant byte address 0x4 - core index']
  #allocation1 [shape = 'u32[144,128]{1,0:T(1,128)}', space=vmem, size = 0x12000, scoped, tag = 'internal scratch']
  %s0 = inlined_call_operand.hbm [shape: bf16[8,128], index: 0, kind: input, shape index: {}]
  %s1 = inlined_call_operand.hbm [shape: bf16[128,128], index: 1, kind: input, shape index: {}]
  %s2 = inlined_call_operand.vmem [shape: f32[1,128], index: 2, kind: input, shape index: {}]
  %s3 = inlined_call_operand.hbm [shape: bf16[128,128], index: 3, kind: input, shape index: {}]
  %s4 = inlined_call_operand.hbm [shape: f32[8,128], index: 4, kind: output, shape index: {}]
  %s5 = sld [smem:[#allocation0]]
  $region38: #{tpu_custom_call.1} parent=0
    _
  %s7 = ssub.s32 1, %s5
  %s8 = scalar_select 0, %s7, %s5
  $region1: #{tpu_custom_call.1} parent=0
    #allocation2 [shape = 'u8[2048]{0}', space=vmem, size = 0x800, scoped, tag = 'input window, operand 0, single buffered']
    #allocation3 [shape = 's32[1]{0}', space=sflag, size = 0x4, scoped, tag = 'scoped memory for tpu_custom_call.1']
    #allocation4 [shape = 's32[1]{0}', space=sflag, size = 0x4, scoped, tag = 'scoped memory for tpu_custom_call.1']
    #allocation5 [shape = 'u8[32768]{0}', space=vmem, size = 0x8000, scoped, tag = 'input window, operand 1, single buffered']
    #allocation6 [shape = 's32[1]{0}', space=sflag, size = 0x4, scoped, tag = 'scoped memory for tpu_custom_call.1']
    #allocation7 [shape = 'u8[32768]{0}', space=vmem, size = 0x8000, scoped, tag = 'input window, operand 3, single buffered']
    #allocation8 [shape = 'u8[4096]{0}', space=vmem, size = 0x1000, scoped, tag = 'output window, operand 0, single buffered']
    %9 = vsyncpa [#allocation3], 0
    %10 = vsyncpa [#allocation6], 0
    %11 = vsyncpa [#allocation4], 0
    // Predicated region
    $region2: #{tpu_custom_call.1} parent=1 // pred_check
      _
    $region3: #{tpu_custom_call.1} parent=1 // pred_check_branch
      %13 = sbr.rel (0) target = $region5
    $region4: #{tpu_custom_call.1} parent=1 // pred_region
      %s15 = ssub.s32 64, 64
      %16 = vsyncadd [#allocation3], %s15
      %s18 = sshll.u32 [#allocation2], 4
      %s19 = int_to_ptr.vmem [resolvable:$true] %s18
      %21 = dma.hbm_to_vmem [thread:$0]  %s0, 64, %s19, [#allocation3]
    $region5: #{tpu_custom_call.1} parent=1 // pred_fallthru
      _
    // Predicated region
    $region6: #{tpu_custom_call.1} parent=1 // pred_check
      _
    $region7: #{tpu_custom_call.1} parent=1 // pred_check_branch
      %23 = sbr.rel (0) target = $region9
    $region8: #{tpu_custom_call.1} parent=1 // pred_region
      %s25 = ssub.s32 1024, 1024
      %26 = vsyncadd [#allocation6], %s25
      %s27 = sshll.u32 [#allocation5], 4
      %s28 = int_to_ptr.vmem [resolvable:$true] %s27
      %33 = dma.hbm_to_vmem [thread:$0]  %s1, 1024, %s28, [#allocation6], 64, 64, 4
    $region9: #{tpu_custom_call.1} parent=1 // pred_fallthru
      _
    // Predicated region
    $region10: #{tpu_custom_call.1} parent=1 // pred_check
      _
    $region11: #{tpu_custom_call.1} parent=1 // pred_check_branch
      %35 = sbr.rel (0) target = $region13
    $region12: #{tpu_custom_call.1} parent=1 // pred_region
      _
    $region13: #{tpu_custom_call.1} parent=1 // pred_fallthru
      _
    // Predicated region
    $region14: #{tpu_custom_call.1} parent=1 // pred_check
      _
    $region15: #{tpu_custom_call.1} parent=1 // pred_check_branch
      %37 = sbr.rel (0) target = $region17
    $region16: #{tpu_custom_call.1} parent=1 // pred_region
      %s39 = ssub.s32 1024, 1024
      %40 = vsyncadd [#allocation6], %s39
      %s41 = sshll.u32 [#allocation7], 4
      %s42 = int_to_ptr.vmem [resolvable:$true] %s41
      %47 = dma.hbm_to_vmem [thread:$0]  %s3, 1024, %s42, [#allocation6], 64, 64, 4
    $region17: #{tpu_custom_call.1} parent=1 // pred_fallthru
      _
    // Predicated region
    $region18: #{tpu_custom_call.1} parent=1 // pred_check
      _
    $region19: #{tpu_custom_call.1} parent=1 // pred_check_branch
      %49 = sbr.rel (0) target = $region21
    $region20: #{tpu_custom_call.1} parent=1 // pred_region
      %50 = dma.done [#allocation3], 64
    $region21: #{tpu_custom_call.1} parent=1 // pred_fallthru
      _
    // Predicated region
    $region22: #{tpu_custom_call.1} parent=1 // pred_check
      _
    $region23: #{tpu_custom_call.1} parent=1 // pred_check_branch
      %52 = sbr.rel (0) target = $region25
    $region24: #{tpu_custom_call.1} parent=1 // pred_region
      %53 = dma.done [#allocation6], 1024
    $region25: #{tpu_custom_call.1} parent=1 // pred_fallthru
      _
    // Predicated region
    $region26: #{tpu_custom_call.1} parent=1 // pred_check
      _
    $region27: #{tpu_custom_call.1} parent=1 // pred_check_branch
      %55 = sbr.rel (0) target = $region29
    $region28: #{tpu_custom_call.1} parent=1 // pred_region
      %56 = dma.done [#allocation6], 1024
    $region29: #{tpu_custom_call.1} parent=1 // pred_fallthru
      _
    %v58 = vld [vmem:[#allocation2] sm:$0xf]
    %v59 = vld [vmem:[#allocation5] sm:$0xf]
    %v60 = vld [vmem:[#allocation5 + $0x4] sm:$0xf]
    %v61 = vld [vmem:[#allocation5 + $0x8] sm:$0xf]
    %v62 = vld [vmem:[#allocation5 + $0xc] sm:$0xf]
    %v63 = vld [vmem:[#allocation5 + $0x10] sm:$0xf]
    %v64 = vld [vmem:[#allocation5 + $0x14] sm:$0xf]
    %v65 = vld [vmem:[#allocation5 + $0x18] sm:$0xf]
    %v66 = vld [vmem:[#allocation5 + $0x1c] sm:$0xf]
    %v67 = vld [vmem:[#allocation5 + $0x20] sm:$0xf]
    %v68 = vld [vmem:[#allocation5 + $0x24] sm:$0xf]
    %v69 = vld [vmem:[#allocation5 + $0x28] sm:$0xf]
    %v70 = vld [vmem:[#allocation5 + $0x2c] sm:$0xf]
    %v71 = vld [vmem:[#allocation5 + $0x30] sm:$0xf]
    %v72 = vld [vmem:[#allocation5 + $0x34] sm:$0xf]
    %v73 = vld [vmem:[#allocation5 + $0x38] sm:$0xf]
    %v74 = vld [vmem:[#allocation5 + $0x3c] sm:$0xf]
    %v75 = vld [vmem:[%s2] sm:$0x1]
    %v77 = vlaneseq
    %v78 = vshrl.u32 %v77, 7
    %v79 = vsub.s32 0, %v78
    %v80 = vrot.slane %v75, %v79
    %v98 = vunpack.c.l.b16 %v59
    %v99 = vunpack.c.l.b16 %v60
    %v100 = vunpack.c.l.b16 %v61
    %v101 = vunpack.c.l.b16 %v62
    %v102 = vunpack.c.l.b16 %v63
    %v103 = vunpack.c.l.b16 %v64
    %v104 = vunpack.c.l.b16 %v65
    %v105 = vunpack.c.l.b16 %v66
    %v106 = vunpack.c.l.b16 %v67
    %v107 = vunpack.c.l.b16 %v68
    %v108 = vunpack.c.l.b16 %v69
    %v109 = vunpack.c.l.b16 %v70
    %v110 = vunpack.c.l.b16 %v71
    %v111 = vunpack.c.l.b16 %v72
    %v112 = vunpack.c.l.b16 %v73
    %v113 = vunpack.c.l.b16 %v74
    %v114 = vpack.c.b16 %v99, %v98
    %v115 = vpack.c.b16 %v101, %v100
    %v116 = vpack.c.b16 %v103, %v102
    %v117 = vpack.c.b16 %v105, %v104
    %v118 = vpack.c.b16 %v107, %v106
    %v119 = vpack.c.b16 %v109, %v108
    %v120 = vpack.c.b16 %v111, %v110
    %v121 = vpack.c.b16 %v113, %v112
    %130 = vmatprep.subr.bf16.mxu0 0
    %131 = vmatpush1.bf16.msra.mxu0 %v114
    %132 = vmatprep.subr.bf16.mxu0 0
    %133 = vmatpush1.bf16.msra.mxu0 %v115
    %134 = vmatprep.subr.bf16.mxu0 0
    %135 = vmatpush1.bf16.msra.mxu0 %v116
    %136 = vmatprep.subr.bf16.mxu0 0
    %137 = vmatpush1.bf16.msra.mxu0 %v117
    %138 = vmatprep.subr.bf16.mxu0 0
    %139 = vmatpush1.bf16.msra.mxu0 %v118
    %140 = vmatprep.subr.bf16.mxu0 0
    %141 = vmatpush1.bf16.msra.mxu0 %v119
    %142 = vmatprep.subr.bf16.mxu0 0
    %143 = vmatpush1.bf16.msra.mxu0 %v120
    %144 = vmatprep.subr.bf16.mxu0 0
    %145 = vmatpush1.bf16.msra.mxu0 %v121
    %146 = vmatprep.subr.bf16.mxu0 0
    %147 = vmatpush1.bf16.msra.mxu0 0
    %148 = vmatprep.subr.bf16.mxu0 0
    %149 = vmatpush1.bf16.msra.mxu0 0
    %150 = vmatprep.subr.bf16.mxu0 0
    %151 = vmatpush1.bf16.msra.mxu0 0
    %152 = vmatprep.subr.bf16.mxu0 0
    %153 = vmatpush1.bf16.msra.mxu0 0
    %154 = vmatprep.subr.bf16.mxu0 0
    %155 = vmatpush1.bf16.msra.mxu0 0
    %156 = vmatprep.subr.bf16.mxu0 0
    %157 = vmatpush1.bf16.msra.mxu0 0
    %158 = vmatprep.subr.bf16.mxu0 0
    %159 = vmatpush1.bf16.msra.mxu0 0
    %160 = vmatprep.subr.bf16.mxu0 0
    %161 = vmatpush1.bf16.msra.mxu0 0
    %162 = vmatprep.mubr.bf16.mxu0 0
    %163 = vmatmul.mubr.bf16.gmra.mrb[0].mxu0 %v58
    %v164 = vpop.f32.mrb[0].mxu0
    %v165 = vadd.f32 %v80, %v164
    %v166 = vpop.f32.mrb[0].mxu0
    %v167 = vpop.f32.mrb[0].mxu0
    %v168 = vpop.f32.mrb[0].mxu0
    %169 = vdwg.mxu0
    %170 = vmax.xlane.f32.xlu0 %v165
    %v171 = vpop.xlane.xlu0 %170
    %v172 = vsub.f32 %v165, %v171
    %v173 = vmul.f32 %v172, 1.442695
    %v174 = vpow.pop %v173
    %175 = vadd.xlane.f32.xlu0 %v174
    %v176 = vpop.xlane.xlu0 %175
    %v177 = vpack.c.bf16 %v174, %v174
    %v178 = vld [vmem:[#allocation7] sm:$0xf]
    %v179 = vld [vmem:[#allocation7 + $0x4] sm:$0xf]
    %v180 = vld [vmem:[#allocation7 + $0x8] sm:$0xf]
    %v181 = vld [vmem:[#allocation7 + $0xc] sm:$0xf]
    %v182 = vld [vmem:[#allocation7 + $0x10] sm:$0xf]
    %v183 = vld [vmem:[#allocation7 + $0x14] sm:$0xf]
    %v184 = vld [vmem:[#allocation7 + $0x18] sm:$0xf]
    %v185 = vld [vmem:[#allocation7 + $0x1c] sm:$0xf]
    %v186 = vld [vmem:[#allocation7 + $0x20] sm:$0xf]
    %v187 = vld [vmem:[#allocation7 + $0x24] sm:$0xf]
    %v188 = vld [vmem:[#allocation7 + $0x28] sm:$0xf]
    %v189 = vld [vmem:[#allocation7 + $0x2c] sm:$0xf]
    %v190 = vld [vmem:[#allocation7 + $0x30] sm:$0xf]
    %v191 = vld [vmem:[#allocation7 + $0x34] sm:$0xf]
    %v192 = vld [vmem:[#allocation7 + $0x38] sm:$0xf]
    %v193 = vld [vmem:[#allocation7 + $0x3c] sm:$0xf]
    %v210 = vunpack.c.l.b16 %v178
    %v211 = vunpack.c.l.b16 %v179
    %v212 = vunpack.c.l.b16 %v180
    %v213 = vunpack.c.l.b16 %v181
    %v214 = vunpack.c.l.b16 %v182
    %v215 = vunpack.c.l.b16 %v183
    %v216 = vunpack.c.l.b16 %v184
    %v217 = vunpack.c.l.b16 %v185
    %v218 = vunpack.c.l.b16 %v186
    %v219 = vunpack.c.l.b16 %v187
    %v220 = vunpack.c.l.b16 %v188
    %v221 = vunpack.c.l.b16 %v189
    %v222 = vunpack.c.l.b16 %v190
    %v223 = vunpack.c.l.b16 %v191
    %v224 = vunpack.c.l.b16 %v192
    %v225 = vunpack.c.l.b16 %v193
    %v226 = vpack.c.b16 %v211, %v210
    %v227 = vpack.c.b16 %v213, %v212
    %v228 = vpack.c.b16 %v215, %v214
    %v229 = vpack.c.b16 %v217, %v216
    %v230 = vpack.c.b16 %v219, %v218
    %v231 = vpack.c.b16 %v221, %v220
    %v232 = vpack.c.b16 %v223, %v222
    %v233 = vpack.c.b16 %v225, %v224
    %242 = vmatprep.subr.bf16.mxu0 0
    %243 = vmatpush1.bf16.msra.mxu0 %v226
    %244 = vmatprep.subr.bf16.mxu0 0
    %245 = vmatpush1.bf16.msra.mxu0 %v227
    %246 = vmatprep.subr.bf16.mxu0 0
    %247 = vmatpush1.bf16.msra.mxu0 %v228
    %248 = vmatprep.subr.bf16.mxu0 0
    %249 = vmatpush1.bf16.msra.mxu0 %v229
    %250 = vmatprep.subr.bf16.mxu0 0
    %251 = vmatpush1.bf16.msra.mxu0 %v230
    %252 = vmatprep.subr.bf16.mxu0 0
    %253 = vmatpush1.bf16.msra.mxu0 %v231
    %254 = vmatprep.subr.bf16.mxu0 0
    %255 = vmatpush1.bf16.msra.mxu0 %v232
    %256 = vmatprep.subr.bf16.mxu0 0
    %257 = vmatpush1.bf16.msra.mxu0 %v233
    %258 = vmatprep.subr.bf16.mxu0 0
    %259 = vmatpush1.bf16.msra.mxu0 0
    %260 = vmatprep.subr.bf16.mxu0 0
    %261 = vmatpush1.bf16.msra.mxu0 0
    %262 = vmatprep.subr.bf16.mxu0 0
    %263 = vmatpush1.bf16.msra.mxu0 0
    %264 = vmatprep.subr.bf16.mxu0 0
    %265 = vmatpush1.bf16.msra.mxu0 0
    %266 = vmatprep.subr.bf16.mxu0 0
    %267 = vmatpush1.bf16.msra.mxu0 0
    %268 = vmatprep.subr.bf16.mxu0 0
    %269 = vmatpush1.bf16.msra.mxu0 0
    %270 = vmatprep.subr.bf16.mxu0 0
    %271 = vmatpush1.bf16.msra.mxu0 0
    %272 = vmatprep.subr.bf16.mxu0 0
    %273 = vmatpush1.bf16.msra.mxu0 0
    %274 = vmatprep.mubr.bf16.mxu0 0
    %275 = vmatmul.mubr.bf16.gmra.mrb[0].mxu0 %v177
    %v276 = vpop.f32.mrb[0].mxu0
    %v277 = vadd.f32 0.0, %v276
    %v278 = vpop.f32.mrb[0].mxu0
    %v279 = vpop.f32.mrb[0].mxu0
    %v280 = vpop.f32.mrb[0].mxu0
    %281 = vdwg.mxu0
    %v282 = vrcp.pop %v176
    %v283 = vmul.f32 %v277, %v282
    %284 = vst [vmem:[#allocation8] sm:$0xff] %v283
    // Predicated region
    $region30: #{tpu_custom_call.1} parent=1 // pred_check
      _
    $region31: #{tpu_custom_call.1} parent=1 // pred_check_branch
      %286 = sbr.rel (0) target = $region33
    $region32: #{tpu_custom_call.1} parent=1 // pred_region
      %s288 = ssub.s32 128, 128
      %289 = vsyncadd [#allocation4], %s288
      %s291 = sshll.u32 [#allocation8], 4
      %s292 = int_to_ptr.vmem [resolvable:$true] %s291
      %294 = dma.vmem_to_hbm [thread:$0]  %s292, 128, %s4, [#allocation4]
    $region33: #{tpu_custom_call.1} parent=1 // pred_fallthru
      _
    // Predicated region
    $region34: #{tpu_custom_call.1} parent=1 // pred_check
      _
    $region35: #{tpu_custom_call.1} parent=1 // pred_check_branch
      %296 = sbr.rel (0) target = $region37
    $region36: #{tpu_custom_call.1} parent=1 // pred_region
      %297 = dma.done [#allocation4], 128
    $region37: #{tpu_custom_call.1} parent=1 // pred_fallthru
      _
    %298 = vsyncpa [#allocation3], 1
    %299 = vsyncpa [#allocation6], 1
    %300 = vsyncpa [#allocation4], 1

</llo_original>
